<compile_context>
chip_gen: v5e
topology: v5e:2x2
jax: 0.10.0
libtpu: 0.0.40
codegen_flags: <defaults>
</compile_context>

<pallas_src>
import functools

import jax
import jax.numpy as jnp
from jax.experimental import pallas as pl
from jax.experimental.pallas import tpu as pltpu


def _env_predictor_kernel(s_ref, x_ref, w1_ref, w1env_ref, b1_ref, w2_ref, b2_ref,
                          out_ref, *, cosine):
    env_val = s_ref[0]      # 0.0 ('src') or 1.0 ('tgt')
    inv_temp = s_ref[1]     # 1 / temp

    # Fold the env-embedding column into the first-layer bias (eliminates concat).
    b1_eff = b1_ref[...] + env_val * w1env_ref[...]                  # (1, H) f32

    # First matmul (MXU), f32 accumulation regardless of input dtype.
    h = jnp.dot(x_ref[...], w1_ref[...],
                preferred_element_type=jnp.float32)                  # (TB, H)
    h = jnp.maximum(h + b1_eff, 0.0)

    if cosine:
        # torch F.normalize(p=2, dim=1); clamp keeps garbage tail rows finite.
        sumsq = jnp.sum(h * h, axis=1, keepdims=True)                # (TB, 1)
        h = h * jax.lax.rsqrt(jnp.maximum(sumsq, 1e-24))             # EUP rsqrt

    # (C, TB): contract W2 (C,H) with h (TB,H) over H -> lane-dense result/stores.
    z = jax.lax.dot_general(w2_ref[...], h,
                            dimension_numbers=(((1,), (1,)), ((), ())),
                            preferred_element_type=jnp.float32)      # (C, TB)

    out_ref[...] = (z + b2_ref[...]) * inv_temp


def prepare_params(params):
    """One-time prep: transpose W1, split env column, pre-make the bf16 copy."""
    w1, b1, w2, b2 = params["w1"], params["b1"], params["w2"], params["b2"]
    w1x_t = jnp.asarray(w1[:, :-1].T)                       # (F, H) feature part
    return {
        "w1x_t": w1x_t,                                     # f32 weights
        "w1x_t_bf16": w1x_t.astype(jnp.bfloat16),           # bf16 weights (made once)
        "w1_env": jnp.asarray(w1[:, -1]).reshape(1, -1),    # (1, H) env column
        "b1": jnp.asarray(b1).reshape(1, -1),               # (1, H)
        "w2": jnp.asarray(w2),                              # (C, H) torch layout (no transpose needed)
        "b2": jnp.asarray(b2).reshape(-1, 1),               # (C, 1)
    }


def _round_up(v, m):
    return ((v + m - 1) // m) * m


def _pick_batch_tile(B, H):
    """Batch tile: big DMAs / few grid steps, bounded by (TB,H) f32 activations."""
    act_budget = 16 * 1024 * 1024                    # ~4 live f32 copies of (TB, H)
    cap = max(256, (act_budget // (4 * H * 4)) // 256 * 256)
    cap = min(cap, 4096)
    if B <= 512:
        return B          # single tile; block dims == full array dims (always legal)
    # >= 2 grid steps so v7x's two TensorCores split the batch; multiple of 256.
    return min(cap, _round_up(pl.cdiv(B, 2), 256))


def env_predictor_forward(x, env, prepared, temp=1.0, cosine=False):
    """x: (B, in_features) f32 or bf16; env: 'src' | 'tgt'; temp: Python float."""
    B, F = x.shape
    H = prepared["b1"].shape[1]
    C = prepared["b2"].shape[0]

    # bf16 only when x already arrives in bf16 (no extra HBM pass to cast x).
    use_bf16 = x.dtype == jnp.bfloat16
    w1 = prepared["w1x_t_bf16"] if use_bf16 else prepared["w1x_t"]
    in_bytes = 2 if use_bf16 else 4

    env_val = 0.0 if env == "src" else 1.0
    scalars = jnp.array([env_val, 1.0 / float(temp)], dtype=jnp.float32)

    TB = _pick_batch_tile(B, H)
    grid = (pl.cdiv(B, TB),)          # ragged last tile handled by Pallas masking

    kernel = functools.partial(_env_predictor_kernel, cosine=cosine)

    cost = pl.CostEstimate(
        flops=2 * B * (F * H + H * C),
        transcendentals=B if cosine else 0,
        bytes_accessed=(B * F * in_bytes + F * H * in_bytes
                        + 2 * H * 4 + C * H * 4 + C * 4 + B * C * 4),
    )

    out_t = pl.pallas_call(
        kernel,
        out_shape=jax.ShapeDtypeStruct((C, B), jnp.float32),   # transposed, lane-dense
        grid=grid,
        in_specs=[
            pl.BlockSpec(memory_space=pltpu.MemorySpace.SMEM),  # [env_val, 1/temp]
            pl.BlockSpec((TB, F), lambda i: (i, 0)),            # x tile (pipelined)
            pl.BlockSpec((F, H), lambda i: (0, 0)),             # W1 (resident)
            pl.BlockSpec((1, H), lambda i: (0, 0)),             # env column of W1
            pl.BlockSpec((1, H), lambda i: (0, 0)),             # b1
            pl.BlockSpec((C, H), lambda i: (0, 0)),             # W2 (resident)
            pl.BlockSpec((C, 1), lambda i: (0, 0)),             # b2
        ],
        out_specs=pl.BlockSpec((C, TB), lambda i: (0, i)),
        compiler_params=pltpu.CompilerParams(
            dimension_semantics=("parallel",),
            vmem_limit_bytes=32 * 1024 * 1024,
        ),
        cost_estimate=cost,
    )(scalars, x, w1, prepared["w1_env"], prepared["b1"], prepared["w2"], prepared["b2"])

    return out_t.T                     # (B, C); transpose of a tiny (C, B) array


def init_params(key, in_features, bottleneck_dim, num_class=2):
    """PyTorch-layout weights: w1 (H, F+1), b1 (H,), w2 (C, H), b2 (C,)."""
    k1, k2, k3, k4 = jax.random.split(key, 4)
    f1 = in_features + 1
    s1 = 1.0 / jnp.sqrt(f1)
    s2 = 1.0 / jnp.sqrt(bottleneck_dim)
    return {
        "w1": jax.random.uniform(k1, (bottleneck_dim, f1), jnp.float32, -s1, s1),
        "b1": jax.random.uniform(k2, (bottleneck_dim,), jnp.float32, -s1, s1),
        "w2": jax.random.uniform(k3, (num_class, bottleneck_dim), jnp.float32, -s2, s2),
        "b2": jax.random.uniform(k4, (num_class,), jnp.float32, -s2, s2),
    }


def _reference(x, env, p, temp, cosine):
    env_val = 0.0 if env == "src" else 1.0
    x1 = jnp.concatenate([x, jnp.full((x.shape[0], 1), env_val, x.dtype)], 1)
    h = jnp.maximum(x1 @ p["w1"].T + p["b1"], 0.0)
    if cosine:
        h = h / jnp.maximum(jnp.linalg.norm(h, axis=1, keepdims=True), 1e-12)
    return (h @ p["w2"].T + p["b2"]) / temp


if __name__ == "__main__":
    key = jax.random.PRNGKey(0)
    kx, kx2, kp = jax.random.split(key, 3)

    in_features = 31          # +1 env column -> 32
    bottleneck_dim = 128

    params = init_params(kp, in_features, bottleneck_dim)
    prepared = prepare_params(params)   # one-time: transpose + env-column split + bf16 copy

    # small batch: single tile, TB == B (no padding anywhere)
    x_small = jax.random.normal(kx, (8, in_features), dtype=jnp.float32)
    logits_src = env_predictor_forward(x_small, "src", prepared, temp=1.0, cosine=False)
    logits_tgt = env_predictor_forward(x_small, "tgt", prepared, temp=2.0, cosine=True)
    jax.block_until_ready(logits_src)
    jax.block_until_ready(logits_tgt)
    assert jnp.allclose(logits_src, _reference(x_small, "src", params, 1.0, False), atol=1e-5)
    assert jnp.allclose(logits_tgt, _reference(x_small, "tgt", params, 2.0, True), atol=1e-5)

    # larger batch, not a multiple of the tile -> multi-step grid + ragged last tile
    x_big = jax.random.normal(kx2, (1200, in_features), dtype=jnp.float32)
    logits_big = env_predictor_forward(x_big, "tgt", prepared, temp=2.0, cosine=True)
    jax.block_until_ready(logits_big)
    assert jnp.allclose(logits_big, _reference(x_big, "tgt", params, 2.0, True), atol=1e-4)

    # bf16 activations arriving from upstream (no wrapper cast of x, bf16 W1 pre-made)
    x_bf16 = x_big.astype(jnp.bfloat16)
    logits_bf16 = env_predictor_forward(x_bf16, "src", prepared, temp=1.0, cosine=False)
    jax.block_until_ready(logits_bf16)
    assert jnp.allclose(logits_bf16,
                        _reference(x_bf16.astype(jnp.float32), "src", params, 1.0, False),
                        atol=5e-2, rtol=5e-2)

    print("KERNEL_OK")
</pallas_src>

<mosaic_0001>
module attributes {stable_mosaic.version = 11 : i64} {
  func.func @_env_predictor_kernel(%arg0: i32, %arg1: memref<2xf32, #tpu.memory_space<smem>>, %arg2: memref<8x31xf32, #tpu.memory_space<vmem>>, %arg3: memref<31x128xf32, #tpu.memory_space<vmem>>, %arg4: memref<1x128xf32, #tpu.memory_space<vmem>>, %arg5: memref<1x128xf32, #tpu.memory_space<vmem>>, %arg6: memref<2x128xf32, #tpu.memory_space<vmem>>, %arg7: memref<2x1xf32, #tpu.memory_space<vmem>>, %arg8: memref<2x8xf32, #tpu.memory_space<vmem>>) attributes {dimension_semantics = [#tpu.dimension_semantics<parallel>], iteration_bounds = array<i64: 1>, scalar_prefetch = 0 : i64, scratch_operands = 0 : i64, tpu.core_type = #tpu.core_type<tc>, window_params = [{transform_indices = @transform_0, window_bounds = array<i64: 2>}, {transform_indices = @transform_1, window_bounds = array<i64: 8, 31>}, {pipeline_mode = #tpu.pipeline_mode<synchronous>, transform_indices = @transform_2, window_bounds = array<i64: 31, 128>}, {pipeline_mode = #tpu.pipeline_mode<synchronous>, transform_indices = @transform_3, window_bounds = array<i64: 1, 128>}, {pipeline_mode = #tpu.pipeline_mode<synchronous>, transform_indices = @transform_4, window_bounds = array<i64: 1, 128>}, {pipeline_mode = #tpu.pipeline_mode<synchronous>, transform_indices = @transform_5, window_bounds = array<i64: 2, 128>}, {pipeline_mode = #tpu.pipeline_mode<synchronous>, transform_indices = @transform_6, window_bounds = array<i64: 2, 1>}, {transform_indices = @transform_7, window_bounds = array<i64: 2, 8>}]} {
    %c0 = arith.constant 0 : index
    %0 = memref.load %arg1[%c0] : memref<2xf32, #tpu.memory_space<smem>>
    %c1 = arith.constant 1 : index
    %1 = memref.load %arg1[%c1] : memref<2xf32, #tpu.memory_space<smem>>
    %c0_0 = arith.constant 0 : index
    %c0_1 = arith.constant 0 : index
    %2 = vector.load %arg5[%c0_0, %c0_1] : memref<1x128xf32, #tpu.memory_space<vmem>>, vector<1x128xf32>
    %c0_2 = arith.constant 0 : index
    %c0_3 = arith.constant 0 : index
    %3 = vector.load %arg4[%c0_2, %c0_3] : memref<1x128xf32, #tpu.memory_space<vmem>>, vector<1x128xf32>
    %4 = vector.broadcast %0 : f32 to vector<1x128xf32>
    %5 = arith.mulf %4, %3 : vector<1x128xf32>
    %6 = arith.addf %2, %5 : vector<1x128xf32>
    %c0_4 = arith.constant 0 : index
    %c0_5 = arith.constant 0 : index
    %7 = vector.load %arg2[%c0_4, %c0_5] : memref<8x31xf32, #tpu.memory_space<vmem>>, vector<8x31xf32>
    %c0_6 = arith.constant 0 : index
    %c0_7 = arith.constant 0 : index
    %8 = vector.load %arg3[%c0_6, %c0_7] : memref<31x128xf32, #tpu.memory_space<vmem>>, vector<31x128xf32>
    %cst = arith.constant dense<0.000000e+00> : vector<8x128xf32>
    %9 = tpu.matmul %7, %8, %cst {dimension_numbers = #tpu.dot_dimension_numbers<[1], [0], [0], [1], [0, 0, 1, 1], [], []>} : vector<8x31xf32>, vector<31x128xf32>, vector<8x128xf32> -> vector<8x128xf32>
    %10 = vector.broadcast %6 : vector<1x128xf32> to vector<8x128xf32>
    %11 = arith.addf %9, %10 : vector<8x128xf32>
    %cst_8 = arith.constant 0.000000e+00 : f32
    %12 = vector.broadcast %cst_8 : f32 to vector<8x128xf32>
    %13 = arith.maximumf %11, %12 : vector<8x128xf32>
    %c0_9 = arith.constant 0 : index
    %c0_10 = arith.constant 0 : index
    %14 = vector.load %arg6[%c0_9, %c0_10] : memref<2x128xf32, #tpu.memory_space<vmem>>, vector<2x128xf32>
    %cst_11 = arith.constant dense<0.000000e+00> : vector<2x8xf32>
    %15 = tpu.matmul %14, %13, %cst_11 {dimension_numbers = #tpu.dot_dimension_numbers<[1], [1], [0], [0], [0, 0, 1, 0], [], []>} : vector<2x128xf32>, vector<8x128xf32>, vector<2x8xf32> -> vector<2x8xf32>
    %c0_12 = arith.constant 0 : index
    %c0_13 = arith.constant 0 : index
    %16 = vector.load %arg7[%c0_12, %c0_13] : memref<2x1xf32, #tpu.memory_space<vmem>>, vector<2x1xf32>
    %17 = vector.broadcast %16 : vector<2x1xf32> to vector<2x8xf32>
    %18 = arith.addf %15, %17 : vector<2x8xf32>
    %19 = vector.broadcast %1 : f32 to vector<2x8xf32>
    %20 = arith.mulf %18, %19 : vector<2x8xf32>
    %c0_14 = arith.constant 0 : index
    %c0_15 = arith.constant 0 : index
    %21 = vector.load %arg8[%c0_14, %c0_15] : memref<2x8xf32, #tpu.memory_space<vmem>>, vector<2x8xf32>
    tpu.vector_store %arg8[%c0_14, %c0_15], %20 {strides = array<i32>} : memref<2x8xf32, #tpu.memory_space<vmem>>, vector<2x8xf32>,
    return
  }
  func.func @transform_0(%arg0: i32) -> i32 {
    %c0_i32 = arith.constant 0 : i32
    %c0_i32_0 = arith.constant 0 : i32
    return %c0_i32 : i32
  }
  func.func @transform_1(%arg0: i32) -> (i32, i32) {
    %c0_i32 = arith.constant 0 : i32
    %c0_i32_0 = arith.constant 0 : i32
    return %arg0, %c0_i32 : i32, i32
  }
  func.func @transform_2(%arg0: i32) -> (i32, i32) {
    %c0_i32 = arith.constant 0 : i32
    %c0_i32_0 = arith.constant 0 : i32
    %c0_i32_1 = arith.constant 0 : i32
    return %c0_i32, %c0_i32_0 : i32, i32
  }
  func.func @transform_3(%arg0: i32) -> (i32, i32) {
    %c0_i32 = arith.constant 0 : i32
    %c0_i32_0 = arith.constant 0 : i32
    %c0_i32_1 = arith.constant 0 : i32
    return %c0_i32, %c0_i32_0 : i32, i32
  }
  func.func @transform_4(%arg0: i32) -> (i32, i32) {
    %c0_i32 = arith.constant 0 : i32
    %c0_i32_0 = arith.constant 0 : i32
    %c0_i32_1 = arith.constant 0 : i32
    return %c0_i32, %c0_i32_0 : i32, i32
  }
  func.func @transform_5(%arg0: i32) -> (i32, i32) {
    %c0_i32 = arith.constant 0 : i32
    %c0_i32_0 = arith.constant 0 : i32
    %c0_i32_1 = arith.constant 0 : i32
    return %c0_i32, %c0_i32_0 : i32, i32
  }
  func.func @transform_6(%arg0: i32) -> (i32, i32) {
    %c0_i32 = arith.constant 0 : i32
    %c0_i32_0 = arith.constant 0 : i32
    %c0_i32_1 = arith.constant 0 : i32
    return %c0_i32, %c0_i32_0 : i32, i32
  }
  func.func @transform_7(%arg0: i32) -> (i32, i32) {
    %c0_i32 = arith.constant 0 : i32
    %c0_i32_0 = arith.constant 0 : i32
    return %c0_i32, %arg0 : i32, i32
  }
}

</mosaic_0001>

<llo_original>
// kernel: tpu_custom_call.1
$region0: #{tpu_custom_call.1}
  #allocation0 [shape = 'u32[]', space=smem, size = 0x4, offset = 0x4, fixed_abs, tag = 'smem constant byte address 0x4 - core index']
  #allocation1 [shape = 'u32[72,128]{1,0:T(1,128)}', space=vmem, size = 0x9000, scoped, tag = 'internal scratch']
  %s0 = inlined_call_operand.vmem [shape: f32[2], index: 0, kind: input, shape index: {}]
  %s1 = inlined_call_operand.hbm [shape: f32[8,31], index: 1, kind: input, shape index: {}]
  %s2 = inlined_call_operand.hbm [shape: f32[31,128], index: 2, kind: input, shape index: {}]
  %s3 = inlined_call_operand.vmem [shape: f32[1,128], index: 3, kind: input, shape index: {}]
  %s4 = inlined_call_operand.vmem [shape: f32[1,128], index: 4, kind: input, shape index: {}]
  %s5 = inlined_call_operand.vmem [shape: f32[2,128], index: 5, kind: input, shape index: {}]
  %s6 = inlined_call_operand.vmem [shape: f32[2,1], index: 6, kind: input, shape index: {}]
  %s7 = inlined_call_operand.hbm [shape: f32[2,8], index: 7, kind: output, shape index: {}]
  %s8 = sld [smem:[#allocation0]]
  $region50: #{tpu_custom_call.1} parent=0
    _
  %s10 = ssub.s32 1, %s8
  %s11 = scalar_select 0, %s10, %s8
  $region1: #{tpu_custom_call.1} parent=0
    #allocation2 [shape = 'u8[512]{0}', space=smem, size = 0x200, scoped, tag = 'input window, operand 0, single buffered']
    #allocation3 [shape = 's32[1]{0}', space=sflag, size = 0x4, scoped, tag = 'scoped memory for tpu_custom_call.1']
    #allocation4 [shape = 's32[1]{0}', space=sflag, size = 0x4, scoped, tag = 'scoped memory for tpu_custom_call.1']
    #allocation5 [shape = 's32[1]{0}', space=sflag, size = 0x4, scoped, tag = 'scoped memory for tpu_custom_call.1']
    #allocation6 [shape = 'u8[4096]{0}', space=vmem, size = 0x1000, scoped, tag = 'input window, operand 1, single buffered']
    #allocation7 [shape = 'u8[16384]{0}', space=vmem, size = 0x4000, scoped, tag = 'input window, operand 2, single buffered']
    #allocation8 [shape = 's32[1]{0}', space=sflag, size = 0x4, scoped, tag = 'scoped memory for tpu_custom_call.1']
    #allocation9 [shape = 'u8[1024]{0}', space=vmem, size = 0x400, scoped, tag = 'output window, operand 0, single buffered']
    %12 = vsyncpa [#allocation5], 0
    %13 = vsyncpa [#allocation3], 0
    %14 = vsyncpa [#allocation8], 0
    %15 = vsyncpa [#allocation4], 0
    // Predicated region
    $region2: #{tpu_custom_call.1} parent=1 // pred_check
      _
    $region3: #{tpu_custom_call.1} parent=1 // pred_check_branch
      %17 = sbr.rel (0) target = $region5
    $region4: #{tpu_custom_call.1} parent=1 // pred_region
      %19 = vsyncadd [#allocation5], 0
      %s21 = sshll.u32 %s0, 4
      %s22 = int_to_ptr.vmem [resolvable:$true] %s21
      %24 = dma.vmem_to_smem %s22, 16, [#allocation2], [#allocation5]
    $region5: #{tpu_custom_call.1} parent=1 // pred_fallthru
      _
    // Predicated region
    $region6: #{tpu_custom_call.1} parent=1 // pred_check
      _
    $region7: #{tpu_custom_call.1} parent=1 // pred_check_branch
      %26 = sbr.rel (0) target = $region9
    $region8: #{tpu_custom_call.1} parent=1 // pred_region
      %28 = vsyncadd [#allocation3], 0
      %s30 = sshll.u32 %s1, 4
      %s31 = int_to_ptr.hbm [resolvable:$true] %s30
      %s32 = sshll.u32 [#allocation6], 4
      %s33 = int_to_ptr.vmem [resolvable:$true] %s32
      %35 = dma.hbm_to_vmem [thread:$0]  %s31, 128, %s33, [#allocation3]
    $region9: #{tpu_custom_call.1} parent=1 // pred_fallthru
      _
    // Predicated region
    $region10: #{tpu_custom_call.1} parent=1 // pred_check
      _
    $region11: #{tpu_custom_call.1} parent=1 // pred_check_branch
      %37 = sbr.rel (0) target = $region13
    $region12: #{tpu_custom_call.1} parent=1 // pred_region
      %39 = vsyncadd [#allocation8], 0
      %s40 = sshll.u32 %s2, 4
      %s41 = int_to_ptr.hbm [resolvable:$true] %s40
      %s42 = sshll.u32 [#allocation7], 4
      %s43 = int_to_ptr.vmem [resolvable:$true] %s42
      %48 = dma.hbm_to_vmem [thread:$0]  %s41, 512, %s43, [#allocation8], 128, 128, 8
    $region13: #{tpu_custom_call.1} parent=1 // pred_fallthru
      _
    // Predicated region
    $region14: #{tpu_custom_call.1} parent=1 // pred_check
      _
    $region15: #{tpu_custom_call.1} parent=1 // pred_check_branch
      %50 = sbr.rel (0) target = $region17
    $region16: #{tpu_custom_call.1} parent=1 // pred_region
      _
    $region17: #{tpu_custom_call.1} parent=1 // pred_fallthru
      _
    // Predicated region
    $region18: #{tpu_custom_call.1} parent=1 // pred_check
      _
    $region19: #{tpu_custom_call.1} parent=1 // pred_check_branch
      %52 = sbr.rel (0) target = $region21
    $region20: #{tpu_custom_call.1} parent=1 // pred_region
      _
    $region21: #{tpu_custom_call.1} parent=1 // pred_fallthru
      _
    // Predicated region
    $region22: #{tpu_custom_call.1} parent=1 // pred_check
      _
    $region23: #{tpu_custom_call.1} parent=1 // pred_check_branch
      %54 = sbr.rel (0) target = $region25
    $region24: #{tpu_custom_call.1} parent=1 // pred_region
      _
    $region25: #{tpu_custom_call.1} parent=1 // pred_fallthru
      _
    // Predicated region
    $region26: #{tpu_custom_call.1} parent=1 // pred_check
      _
    $region27: #{tpu_custom_call.1} parent=1 // pred_check_branch
      %56 = sbr.rel (0) target = $region29
    $region28: #{tpu_custom_call.1} parent=1 // pred_region
      _
    $region29: #{tpu_custom_call.1} parent=1 // pred_fallthru
      _
    // Predicated region
    $region30: #{tpu_custom_call.1} parent=1 // pred_check
      _
    $region31: #{tpu_custom_call.1} parent=1 // pred_check_branch
      %58 = sbr.rel (0) target = $region33
    $region32: #{tpu_custom_call.1} parent=1 // pred_region
      %60 = dma.done [#allocation5], 16
    $region33: #{tpu_custom_call.1} parent=1 // pred_fallthru
      _
    // Predicated region
    $region34: #{tpu_custom_call.1} parent=1 // pred_check
      _
    $region35: #{tpu_custom_call.1} parent=1 // pred_check_branch
      %62 = sbr.rel (0) target = $region37
    $region36: #{tpu_custom_call.1} parent=1 // pred_region
      %64 = dma.done [#allocation3], 128
    $region37: #{tpu_custom_call.1} parent=1 // pred_fallthru
      _
    // Predicated region
    $region38: #{tpu_custom_call.1} parent=1 // pred_check
      _
    $region39: #{tpu_custom_call.1} parent=1 // pred_check_branch
      %66 = sbr.rel (0) target = $region41
    $region40: #{tpu_custom_call.1} parent=1 // pred_region
      %68 = dma.done [#allocation8], 512
    $region41: #{tpu_custom_call.1} parent=1 // pred_fallthru
      _
    %69 = sfence
    %s70 = sld [smem:[#allocation2]]
    %s71 = sld [smem:[#allocation2 + $0x1]]
    %v72 = vld [vmem:[%s4] sm:$0x1]
    %v73 = vld [vmem:[%s3] sm:$0x1]
    %v74 = vstv %s70
    %v75 = vmul.f32 %v74, %v73
    %v76 = vadd.f32 %v72, %v75
    %v77 = vld [vmem:[#allocation6] sm:$0xff]
    %v78 = vld [vmem:[#allocation7] sm:$0xff]
    %v79 = vld [vmem:[#allocation7 + $0x8] sm:$0xff]
    %v80 = vld [vmem:[#allocation7 + $0x10] sm:$0xff]
    %v81 = vld [vmem:[#allocation7 + $0x18] sm:$0x7f]
    %v83 = vperm.slane %v76, 0
    %vm85 = vcmask 252928
    %v87 = vsel %vm85, %v77, 0
    %vm89 = vcmask 1046528
    %v91 = vsel %vm89, %v81, 0
    %93 = vmatpush.msra.mxu0 0.0
    %94 = vmatpush.msra.mxu0 0.0
    %95 = vmatpush.msra.mxu0 0.0
    %96 = vmatpush.msra.mxu0 0.0
    %97 = vmatpush.msra.mxu0 0.0
    %98 = vmatpush.msra.mxu0 0.0
    %99 = vmatpush.msra.mxu0 0.0
    %100 = vmatpush.msra.mxu0 0.0
    %101 = vmatpush.msra.mxu0 0.0
    %102 = vmatpush.msra.mxu0 0.0
    %103 = vmatpush.msra.mxu0 0.0
    %104 = vmatpush.msra.mxu0 0.0
    %105 = vmatpush.msra.mxu0 %v91
    %106 = vmatpush.msra.mxu0 %v80
    %107 = vmatpush.msra.mxu0 %v79
    %108 = vmatpush.msra.mxu0 %v78
    %109 = vmatmul.f32.gmra.mxu0 %v87
    %v110 = vpop.f32.mrf.mxu0
    %v111 = vadd.f32 %v83, %v110
    %112 = vdwg.mxu0
    %v113 = vmax.f32 %v111, 0.0
    %v114 = vld [vmem:[%s5] sm:$0x3]
    %v115 = vld [vmem:[%s6] sm:$0x3]
    %117 = vset.pattern.permute.xlu0 0
    %118 = vperm.xlu0 %117, %v115
    %v119 = vpop.permute.xlu0 %118
    %121 = vmatpush.xpose.msra.mxu0 0.0
    %122 = vmatpush.xpose.msra.mxu0 0.0
    %123 = vmatpush.xpose.msra.mxu0 0.0
    %124 = vmatpush.xpose.msra.mxu0 0.0
    %125 = vmatpush.xpose.msra.mxu0 0.0
    %126 = vmatpush.xpose.msra.mxu0 0.0
    %127 = vmatpush.xpose.msra.mxu0 0.0
    %128 = vmatpush.xpose.msra.mxu0 0.0
    %129 = vmatpush.xpose.msra.mxu0 0.0
    %130 = vmatpush.xpose.msra.mxu0 0.0
    %131 = vmatpush.xpose.msra.mxu0 0.0
    %132 = vmatpush.xpose.msra.mxu0 0.0
    %133 = vmatpush.xpose.msra.mxu0 0.0
    %134 = vmatpush.xpose.msra.mxu0 0.0
    %135 = vmatpush.xpose.msra.mxu0 0.0
    %136 = vmatpush.xpose.msra.mxu0 %v113
    %137 = vmatmul.f32.gmra.mxu0 %v114
    %v138 = vpop.f32.mrf.mxu0
    %v139 = vadd.f32 %v119, %v138
    %140 = vdwg.mxu0
    %v141 = vstv %s71
    %v142 = vmul.f32 %v139, %v141
    %vm143 = vcmask 58368
    %144 = vst.msk [vmem:[#allocation9] sm:$0x3] %vm143, %v142
    // Predicated region
    $region42: #{tpu_custom_call.1} parent=1 // pred_check
      _
    $region43: #{tpu_custom_call.1} parent=1 // pred_check_branch
      %146 = sbr.rel (0) target = $region45
    $region44: #{tpu_custom_call.1} parent=1 // pred_region
      %148 = vsyncadd [#allocation4], 0
      %s150 = sshll.u32 [#allocation9], 4
      %s151 = int_to_ptr.vmem [resolvable:$true] %s150
      %s152 = sshll.u32 %s7, 4
      %s153 = int_to_ptr.hbm [resolvable:$true] %s152
      %155 = dma.vmem_to_hbm [thread:$0]  %s151, 32, %s153, [#allocation4]
    $region45: #{tpu_custom_call.1} parent=1 // pred_fallthru
      _
    // Predicated region
    $region46: #{tpu_custom_call.1} parent=1 // pred_check
      _
    $region47: #{tpu_custom_call.1} parent=1 // pred_check_branch
      %157 = sbr.rel (0) target = $region49
    $region48: #{tpu_custom_call.1} parent=1 // pred_region
      %159 = dma.done [#allocation4], 32
    $region49: #{tpu_custom_call.1} parent=1 // pred_fallthru
      _
    %160 = vsyncpa [#allocation3], 1
    %161 = vsyncpa [#allocation8], 1
    %162 = vsyncpa [#allocation4], 1
    %163 = vsyncpa [#allocation5], 1

</llo_original>
